<compile_context>
chip_gen: v7x
topology: tpu7x:2x2x1
jax: 0.10.0
libtpu: 0.0.40
codegen_flags: <defaults>
</compile_context>

<pallas_src>
import numpy as np
import jax
import jax.numpy as jnp
from jax.experimental import pallas as pl
from jax.experimental.pallas import tpu as pltpu


def _make_masks(H, W, btile):
    """(9, btile*H*W) validity mask per 3x3 offset, tiled over the lane-batched samples."""
    S = H * W
    m = np.zeros((9, S), np.float32)
    k = 0
    for dy in (-1, 0, 1):
        for dx in (-1, 0, 1):
            for h in range(H):
                for w in range(W):
                    if 0 <= h + dy < H and 0 <= w + dx < W:
                        m[k, h * W + w] = 1.0
            k += 1
    return np.tile(m, (1, btile))


def _make_kernel(H, W, btile):
    S = H * W
    L = btile * S

    def conv3x3(feat, w_ref, masks):
        # feat: (Cin, L); w_ref: (Cout, 9*Cin); masks: (9, L)
        parts = []
        k = 0
        for dy in (-1, 0, 1):
            for dx in (-1, 0, 1):
                d = dy * W + dx                     # flattened source offset
                if d == 0:
                    shifted = feat
                else:
                    # shifted[:, s] = feat[:, (s + d) % L]; every position whose
                    # source crosses a row / sample boundary is masked to zero.
                    shifted = pltpu.roll(feat, shift=(-d) % L, axis=1)
                parts.append(shifted * masks[k:k + 1, :])
                k += 1
        stacked = jnp.concatenate(parts, axis=0)     # (9*Cin, L)
        return jnp.dot(w_ref[...], stacked, preferred_element_type=jnp.float32)

    def kernel(x_ref, c_ref, w1_ref, w2_ref, m_ref, out_ref):
        masks = m_ref[...]                                        # (9, L)
        h1 = jnp.maximum(conv3x3(x_ref[...], w1_ref, masks), 0.0)  # (Cout, L)
        h2 = conv3x3(h1, w2_ref, masks)                            # (Cout, L)
        out_ref[...] = jnp.maximum(h2 + c_ref[...], 0.0)

    return kernel


def residual_block_forward(x, condition, w1, w2, *, btile=2):
    """x: (B, Cin, H, W); condition: (B, Cout, H, W); w1: (Cout, Cin, 3, 3); w2: (Cout, Cout, 3, 3)."""
    B, Cin, H, W = x.shape
    Cout = w1.shape[0]
    S = H * W
    assert B % btile == 0, "B must be divisible by btile"
    L = btile * S
    n_steps = B // btile

    # (B, C, H, W) -> (C, B*S): channels on sublanes, batched flattened spatial on lanes.
    x_l = jnp.transpose(x.reshape(B, Cin, S).astype(jnp.float32), (1, 0, 2)).reshape(Cin, B * S)
    c_l = jnp.transpose(condition.reshape(B, Cout, S).astype(jnp.float32), (1, 0, 2)).reshape(Cout, B * S)

    # Conv weights fused over the 9 offsets: (Cout, Cin, 3, 3) -> (Cout, 9*Cin),
    # offset-major / input-channel-minor (matches the in-kernel stacking order).
    w1_f = jnp.transpose(w1.astype(jnp.float32), (0, 2, 3, 1)).reshape(Cout, 9 * Cin)
    w2_f = jnp.transpose(w2.astype(jnp.float32), (0, 2, 3, 1)).reshape(Cout, 9 * Cout)

    masks = jnp.asarray(_make_masks(H, W, btile))                  # (9, L)

    kernel = _make_kernel(H, W, btile)

    out = pl.pallas_call(
        kernel,
        out_shape=jax.ShapeDtypeStruct((Cout, B * S), jnp.float32),
        grid=(n_steps,),
        in_specs=[
            pl.BlockSpec((Cin, L), lambda b: (0, b)),          # x slab
            pl.BlockSpec((Cout, L), lambda b: (0, b)),         # condition slab
            pl.BlockSpec((Cout, 9 * Cin), lambda b: (0, 0)),   # fused conv1 weight
            pl.BlockSpec((Cout, 9 * Cout), lambda b: (0, 0)),  # fused conv2 weight
            pl.BlockSpec((9, L), lambda b: (0, 0)),            # spatial validity masks
        ],
        out_specs=pl.BlockSpec((Cout, L), lambda b: (0, b)),
        compiler_params=pltpu.CompilerParams(
            dimension_semantics=("parallel",)),                # batch axis: no accumulator
    )(x_l, c_l, w1_f, w2_f, masks)

    # (Cout, B*S) -> (B, Cout, H, W)
    return jnp.transpose(out.reshape(Cout, B, S), (1, 0, 2)).reshape(B, Cout, H, W)


def reference_forward(x, condition, w1, w2):
    """Pure-JAX reference matching the PyTorch ResidualBlock.forward (stride=1)."""
    def conv(inp, w):
        return jax.lax.conv_general_dilated(
            inp, w, window_strides=(1, 1), padding=((1, 1), (1, 1)),
            dimension_numbers=('NCHW', 'OIHW', 'NCHW'))

    out = jax.nn.relu(conv(x, w1))
    out = conv(out, w2)
    out = out + condition
    return jax.nn.relu(out)


if __name__ == "__main__":
    B, C_IN, C_OUT, H, W = 4, 4, 8, 8, 16   # spatial 8*16=128 -> lane-aligned blocks
    key = jax.random.PRNGKey(0)
    kx, kc, k1, k2 = jax.random.split(key, 4)

    x = jax.random.normal(kx, (B, C_IN, H, W), jnp.float32)
    condition = jax.random.normal(kc, (B, C_OUT, H, W), jnp.float32)
    w1 = jax.random.normal(k1, (C_OUT, C_IN, 3, 3), jnp.float32) / np.sqrt(C_IN * 9)
    w2 = jax.random.normal(k2, (C_OUT, C_OUT, 3, 3), jnp.float32) / np.sqrt(C_OUT * 9)

    out = residual_block_forward(x, condition, w1, w2, btile=2)
    out = jax.block_until_ready(out)

    ref = reference_forward(x, condition, w1, w2)
    np.testing.assert_allclose(np.asarray(out), np.asarray(ref), rtol=1e-4, atol=1e-5)
    print("KERNEL_OK")
</pallas_src>

<mosaic_0001>
module attributes {stable_mosaic.version = 11 : i64} {
  func.func @kernel(%arg0: i32, %arg1: memref<4x256xf32, #tpu.memory_space<vmem>>, %arg2: memref<8x256xf32, #tpu.memory_space<vmem>>, %arg3: memref<8x36xf32, #tpu.memory_space<vmem>>, %arg4: memref<8x72xf32, #tpu.memory_space<vmem>>, %arg5: memref<9x256xf32, #tpu.memory_space<vmem>>, %arg6: memref<8x256xf32, #tpu.memory_space<vmem>>) attributes {dimension_semantics = [#tpu.dimension_semantics<parallel>], iteration_bounds = array<i64: 2>, scalar_prefetch = 0 : i64, scratch_operands = 0 : i64, tpu.core_type = #tpu.core_type<tc>, window_params = [{transform_indices = @transform_0, window_bounds = array<i64: 4, 256>}, {transform_indices = @transform_1, window_bounds = array<i64: 8, 256>}, {pipeline_mode = #tpu.pipeline_mode<synchronous>, transform_indices = @transform_2, window_bounds = array<i64: 8, 36>}, {pipeline_mode = #tpu.pipeline_mode<synchronous>, transform_indices = @transform_3, window_bounds = array<i64: 8, 72>}, {pipeline_mode = #tpu.pipeline_mode<synchronous>, transform_indices = @transform_4, window_bounds = array<i64: 9, 256>}, {transform_indices = @transform_5, window_bounds = array<i64: 8, 256>}]} {
    %c0 = arith.constant 0 : index
    %c0_0 = arith.constant 0 : index
    %0 = vector.load %arg5[%c0, %c0_0] : memref<9x256xf32, #tpu.memory_space<vmem>>, vector<9x256xf32>
    %c0_1 = arith.constant 0 : index
    %c0_2 = arith.constant 0 : index
    %1 = vector.load %arg1[%c0_1, %c0_2] : memref<4x256xf32, #tpu.memory_space<vmem>>, vector<4x256xf32>
    %c17_i32 = arith.constant 17 : i32
    %2 = tpu.dynamic_rotate %1 by %c17_i32 dim 1 : vector<4x256xf32>, i32 -> vector<4x256xf32>
    %3 = vector.extract_strided_slice %0 {offsets = [0, 0], sizes = [1, 256], strides = [1, 1]} : vector<9x256xf32> to vector<1x256xf32>
    %4 = vector.broadcast %3 : vector<1x256xf32> to vector<4x256xf32>
    %5 = arith.mulf %2, %4 : vector<4x256xf32>
    %c16_i32 = arith.constant 16 : i32
    %6 = tpu.dynamic_rotate %1 by %c16_i32 dim 1 : vector<4x256xf32>, i32 -> vector<4x256xf32>
    %7 = vector.extract_strided_slice %0 {offsets = [1, 0], sizes = [1, 256], strides = [1, 1]} : vector<9x256xf32> to vector<1x256xf32>
    %8 = vector.broadcast %7 : vector<1x256xf32> to vector<4x256xf32>
    %9 = arith.mulf %6, %8 : vector<4x256xf32>
    %c15_i32 = arith.constant 15 : i32
    %10 = tpu.dynamic_rotate %1 by %c15_i32 dim 1 : vector<4x256xf32>, i32 -> vector<4x256xf32>
    %11 = vector.extract_strided_slice %0 {offsets = [2, 0], sizes = [1, 256], strides = [1, 1]} : vector<9x256xf32> to vector<1x256xf32>
    %12 = vector.broadcast %11 : vector<1x256xf32> to vector<4x256xf32>
    %13 = arith.mulf %10, %12 : vector<4x256xf32>
    %c1_i32 = arith.constant 1 : i32
    %14 = tpu.dynamic_rotate %1 by %c1_i32 dim 1 : vector<4x256xf32>, i32 -> vector<4x256xf32>
    %15 = vector.extract_strided_slice %0 {offsets = [3, 0], sizes = [1, 256], strides = [1, 1]} : vector<9x256xf32> to vector<1x256xf32>
    %16 = vector.broadcast %15 : vector<1x256xf32> to vector<4x256xf32>
    %17 = arith.mulf %14, %16 : vector<4x256xf32>
    %18 = vector.extract_strided_slice %0 {offsets = [4, 0], sizes = [1, 256], strides = [1, 1]} : vector<9x256xf32> to vector<1x256xf32>
    %19 = vector.broadcast %18 : vector<1x256xf32> to vector<4x256xf32>
    %20 = arith.mulf %1, %19 : vector<4x256xf32>
    %c255_i32 = arith.constant 255 : i32
    %21 = tpu.dynamic_rotate %1 by %c255_i32 dim 1 : vector<4x256xf32>, i32 -> vector<4x256xf32>
    %22 = vector.extract_strided_slice %0 {offsets = [5, 0], sizes = [1, 256], strides = [1, 1]} : vector<9x256xf32> to vector<1x256xf32>
    %23 = vector.broadcast %22 : vector<1x256xf32> to vector<4x256xf32>
    %24 = arith.mulf %21, %23 : vector<4x256xf32>
    %c241_i32 = arith.constant 241 : i32
    %25 = tpu.dynamic_rotate %1 by %c241_i32 dim 1 : vector<4x256xf32>, i32 -> vector<4x256xf32>
    %26 = vector.extract_strided_slice %0 {offsets = [6, 0], sizes = [1, 256], strides = [1, 1]} : vector<9x256xf32> to vector<1x256xf32>
    %27 = vector.broadcast %26 : vector<1x256xf32> to vector<4x256xf32>
    %28 = arith.mulf %25, %27 : vector<4x256xf32>
    %c240_i32 = arith.constant 240 : i32
    %29 = tpu.dynamic_rotate %1 by %c240_i32 dim 1 : vector<4x256xf32>, i32 -> vector<4x256xf32>
    %30 = vector.extract_strided_slice %0 {offsets = [7, 0], sizes = [1, 256], strides = [1, 1]} : vector<9x256xf32> to vector<1x256xf32>
    %31 = vector.broadcast %30 : vector<1x256xf32> to vector<4x256xf32>
    %32 = arith.mulf %29, %31 : vector<4x256xf32>
    %c239_i32 = arith.constant 239 : i32
    %33 = tpu.dynamic_rotate %1 by %c239_i32 dim 1 : vector<4x256xf32>, i32 -> vector<4x256xf32>
    %34 = vector.extract_strided_slice %0 {offsets = [8, 0], sizes = [1, 256], strides = [1, 1]} : vector<9x256xf32> to vector<1x256xf32>
    %35 = vector.broadcast %34 : vector<1x256xf32> to vector<4x256xf32>
    %36 = arith.mulf %33, %35 : vector<4x256xf32>
    %37 = tpu.concatenate %5, %9, %13, %17, %20, %24, %28, %32, %36 in 0 : vector<4x256xf32>, vector<4x256xf32>, vector<4x256xf32>, vector<4x256xf32>, vector<4x256xf32>, vector<4x256xf32>, vector<4x256xf32>, vector<4x256xf32>, vector<4x256xf32> -> vector<36x256xf32>
    %c0_3 = arith.constant 0 : index
    %c0_4 = arith.constant 0 : index
    %38 = vector.load %arg3[%c0_3, %c0_4] : memref<8x36xf32, #tpu.memory_space<vmem>>, vector<8x36xf32>
    %cst = arith.constant dense<0.000000e+00> : vector<8x256xf32>
    %39 = tpu.matmul %38, %37, %cst {dimension_numbers = #tpu.dot_dimension_numbers<[1], [0], [0], [1], [0, 0, 1, 1], [], []>} : vector<8x36xf32>, vector<36x256xf32>, vector<8x256xf32> -> vector<8x256xf32>
    %cst_5 = arith.constant 0.000000e+00 : f32
    %40 = vector.broadcast %cst_5 : f32 to vector<8x256xf32>
    %41 = arith.maximumf %39, %40 : vector<8x256xf32>
    %c17_i32_6 = arith.constant 17 : i32
    %42 = tpu.dynamic_rotate %41 by %c17_i32_6 dim 1 : vector<8x256xf32>, i32 -> vector<8x256xf32>
    %43 = vector.extract_strided_slice %0 {offsets = [0, 0], sizes = [1, 256], strides = [1, 1]} : vector<9x256xf32> to vector<1x256xf32>
    %44 = vector.broadcast %43 : vector<1x256xf32> to vector<8x256xf32>
    %45 = arith.mulf %42, %44 : vector<8x256xf32>
    %c16_i32_7 = arith.constant 16 : i32
    %46 = tpu.dynamic_rotate %41 by %c16_i32_7 dim 1 : vector<8x256xf32>, i32 -> vector<8x256xf32>
    %47 = vector.extract_strided_slice %0 {offsets = [1, 0], sizes = [1, 256], strides = [1, 1]} : vector<9x256xf32> to vector<1x256xf32>
    %48 = vector.broadcast %47 : vector<1x256xf32> to vector<8x256xf32>
    %49 = arith.mulf %46, %48 : vector<8x256xf32>
    %c15_i32_8 = arith.constant 15 : i32
    %50 = tpu.dynamic_rotate %41 by %c15_i32_8 dim 1 : vector<8x256xf32>, i32 -> vector<8x256xf32>
    %51 = vector.extract_strided_slice %0 {offsets = [2, 0], sizes = [1, 256], strides = [1, 1]} : vector<9x256xf32> to vector<1x256xf32>
    %52 = vector.broadcast %51 : vector<1x256xf32> to vector<8x256xf32>
    %53 = arith.mulf %50, %52 : vector<8x256xf32>
    %c1_i32_9 = arith.constant 1 : i32
    %54 = tpu.dynamic_rotate %41 by %c1_i32_9 dim 1 : vector<8x256xf32>, i32 -> vector<8x256xf32>
    %55 = vector.extract_strided_slice %0 {offsets = [3, 0], sizes = [1, 256], strides = [1, 1]} : vector<9x256xf32> to vector<1x256xf32>
    %56 = vector.broadcast %55 : vector<1x256xf32> to vector<8x256xf32>
    %57 = arith.mulf %54, %56 : vector<8x256xf32>
    %58 = vector.extract_strided_slice %0 {offsets = [4, 0], sizes = [1, 256], strides = [1, 1]} : vector<9x256xf32> to vector<1x256xf32>
    %59 = vector.broadcast %58 : vector<1x256xf32> to vector<8x256xf32>
    %60 = arith.mulf %41, %59 : vector<8x256xf32>
    %c255_i32_10 = arith.constant 255 : i32
    %61 = tpu.dynamic_rotate %41 by %c255_i32_10 dim 1 : vector<8x256xf32>, i32 -> vector<8x256xf32>
    %62 = vector.extract_strided_slice %0 {offsets = [5, 0], sizes = [1, 256], strides = [1, 1]} : vector<9x256xf32> to vector<1x256xf32>
    %63 = vector.broadcast %62 : vector<1x256xf32> to vector<8x256xf32>
    %64 = arith.mulf %61, %63 : vector<8x256xf32>
    %c241_i32_11 = arith.constant 241 : i32
    %65 = tpu.dynamic_rotate %41 by %c241_i32_11 dim 1 : vector<8x256xf32>, i32 -> vector<8x256xf32>
    %66 = vector.extract_strided_slice %0 {offsets = [6, 0], sizes = [1, 256], strides = [1, 1]} : vector<9x256xf32> to vector<1x256xf32>
    %67 = vector.broadcast %66 : vector<1x256xf32> to vector<8x256xf32>
    %68 = arith.mulf %65, %67 : vector<8x256xf32>
    %c240_i32_12 = arith.constant 240 : i32
    %69 = tpu.dynamic_rotate %41 by %c240_i32_12 dim 1 : vector<8x256xf32>, i32 -> vector<8x256xf32>
    %70 = vector.extract_strided_slice %0 {offsets = [7, 0], sizes = [1, 256], strides = [1, 1]} : vector<9x256xf32> to vector<1x256xf32>
    %71 = vector.broadcast %70 : vector<1x256xf32> to vector<8x256xf32>
    %72 = arith.mulf %69, %71 : vector<8x256xf32>
    %c239_i32_13 = arith.constant 239 : i32
    %73 = tpu.dynamic_rotate %41 by %c239_i32_13 dim 1 : vector<8x256xf32>, i32 -> vector<8x256xf32>
    %74 = vector.extract_strided_slice %0 {offsets = [8, 0], sizes = [1, 256], strides = [1, 1]} : vector<9x256xf32> to vector<1x256xf32>
    %75 = vector.broadcast %74 : vector<1x256xf32> to vector<8x256xf32>
    %76 = arith.mulf %73, %75 : vector<8x256xf32>
    %77 = tpu.concatenate %45, %49, %53, %57, %60, %64, %68, %72, %76 in 0 : vector<8x256xf32>, vector<8x256xf32>, vector<8x256xf32>, vector<8x256xf32>, vector<8x256xf32>, vector<8x256xf32>, vector<8x256xf32>, vector<8x256xf32>, vector<8x256xf32> -> vector<72x256xf32>
    %c0_14 = arith.constant 0 : index
    %c0_15 = arith.constant 0 : index
    %78 = vector.load %arg4[%c0_14, %c0_15] : memref<8x72xf32, #tpu.memory_space<vmem>>, vector<8x72xf32>
    %cst_16 = arith.constant dense<0.000000e+00> : vector<8x256xf32>
    %79 = tpu.matmul %78, %77, %cst_16 {dimension_numbers = #tpu.dot_dimension_numbers<[1], [0], [0], [1], [0, 0, 1, 1], [], []>} : vector<8x72xf32>, vector<72x256xf32>, vector<8x256xf32> -> vector<8x256xf32>
    %c0_17 = arith.constant 0 : index
    %c0_18 = arith.constant 0 : index
    %80 = vector.load %arg2[%c0_17, %c0_18] : memref<8x256xf32, #tpu.memory_space<vmem>>, vector<8x256xf32>
    %81 = arith.addf %79, %80 : vector<8x256xf32>
    %cst_19 = arith.constant 0.000000e+00 : f32
    %82 = vector.broadcast %cst_19 : f32 to vector<8x256xf32>
    %83 = arith.maximumf %81, %82 : vector<8x256xf32>
    %c0_20 = arith.constant 0 : index
    %c0_21 = arith.constant 0 : index
    %84 = vector.load %arg6[%c0_20, %c0_21] : memref<8x256xf32, #tpu.memory_space<vmem>>, vector<8x256xf32>
    tpu.vector_store %arg6[%c0_20, %c0_21], %83 {strides = array<i32>} : memref<8x256xf32, #tpu.memory_space<vmem>>, vector<8x256xf32>,
    return
  }
  func.func @transform_0(%arg0: i32) -> (i32, i32) {
    %c0_i32 = arith.constant 0 : i32
    %c0_i32_0 = arith.constant 0 : i32
    return %c0_i32, %arg0 : i32, i32
  }
  func.func @transform_1(%arg0: i32) -> (i32, i32) {
    %c0_i32 = arith.constant 0 : i32
    %c0_i32_0 = arith.constant 0 : i32
    return %c0_i32, %arg0 : i32, i32
  }
  func.func @transform_2(%arg0: i32) -> (i32, i32) {
    %c0_i32 = arith.constant 0 : i32
    %c0_i32_0 = arith.constant 0 : i32
    %c0_i32_1 = arith.constant 0 : i32
    return %c0_i32, %c0_i32_0 : i32, i32
  }
  func.func @transform_3(%arg0: i32) -> (i32, i32) {
    %c0_i32 = arith.constant 0 : i32
    %c0_i32_0 = arith.constant 0 : i32
    %c0_i32_1 = arith.constant 0 : i32
    return %c0_i32, %c0_i32_0 : i32, i32
  }
  func.func @transform_4(%arg0: i32) -> (i32, i32) {
    %c0_i32 = arith.constant 0 : i32
    %c0_i32_0 = arith.constant 0 : i32
    %c0_i32_1 = arith.constant 0 : i32
    return %c0_i32, %c0_i32_0 : i32, i32
  }
  func.func @transform_5(%arg0: i32) -> (i32, i32) {
    %c0_i32 = arith.constant 0 : i32
    %c0_i32_0 = arith.constant 0 : i32
    return %c0_i32, %arg0 : i32, i32
  }
}

</mosaic_0001>

<llo_original>
// kernel: tpu_custom_call.1
$region0: #{tpu_custom_call.1}
  #allocation0 [shape = 'u32[]', space=smem, size = 0x4, offset = 0x4, fixed_abs, tag = 'smem constant byte address 0x4 - core index']
  #allocation1 [shape = 'u32[144,128]{1,0:T(1,128)}', space=vmem, size = 0x12000, scoped, tag = 'internal scratch']
  %s0 = inlined_call_operand.hbm [shape: f32[4,512], index: 0, kind: input, shape index: {}]
  %s1 = inlined_call_operand.hbm [shape: f32[8,512], index: 1, kind: input, shape index: {}]
  %s2 = inlined_call_operand.hbm [shape: f32[8,36], index: 2, kind: input, shape index: {}]
  %s3 = inlined_call_operand.vmem [shape: f32[8,72], index: 3, kind: input, shape index: {}]
  %s4 = inlined_call_operand.hbm [shape: f32[9,256], index: 4, kind: input, shape index: {}]
  %s5 = inlined_call_operand.hbm [shape: f32[8,512], index: 5, kind: output, shape index: {}]
  %s6 = sld [smem:[#allocation0]]
  $region69: #{tpu_custom_call.1} parent=0
    _
  %s8 = ssub.s32 1, %s6
  %s9 = scalar_select 0, %s8, %s6
  $region1: #{tpu_custom_call.1} parent=0
    #allocation2 [shape = 'u8[8192]{0}', space=vmem, size = 0x2000, scoped, tag = 'input window, operand 0']
    #allocation3 [shape = 's32[2]{0}', space=sflag, size = 0x8, scoped, tag = 'scoped memory for tpu_custom_call.1']
    #allocation4 [shape = 's32[2]{0}', space=sflag, size = 0x8, scoped, tag = 'scoped memory for tpu_custom_call.1']
    #allocation5 [shape = 'u8[16384]{0}', space=vmem, size = 0x4000, scoped, tag = 'input window, operand 1']
    #allocation6 [shape = 's32[2]{0}', space=sflag, size = 0x8, scoped, tag = 'scoped memory for tpu_custom_call.1']
    #allocation7 [shape = 'u8[4096]{0}', space=vmem, size = 0x1000, scoped, tag = 'input window, operand 2, single buffered']
    #allocation8 [shape = 'u8[16384]{0}', space=vmem, size = 0x4000, scoped, tag = 'input window, operand 4, single buffered']
    #allocation9 [shape = 's32[1]{0}', space=sflag, size = 0x4, scoped, tag = 'scoped memory for tpu_custom_call.1']
    #allocation10 [shape = 'u8[16384]{0}', space=vmem, size = 0x4000, scoped, tag = 'output window, operand 0']
    %10 = vsyncpa [#allocation3], 0
    %s11 = scalar_lea.sflag [#allocation3], 1
    %12 = vsyncpa %s11, 0
    %13 = vsyncpa [#allocation6], 0
    %s14 = scalar_lea.sflag [#allocation6], 1
    %15 = vsyncpa %s14, 0
    %16 = vsyncpa [#allocation9], 0
    %17 = vsyncpa [#allocation4], 0
    %s18 = scalar_lea.sflag [#allocation4], 1
    %19 = vsyncpa %s18, 0
    loop: start=0, step=1, limit=4
    $region2: #{tpu_custom_call.1} parent=1 // loop_pre_header
      _
    $region3: #{tpu_custom_call.1} parent=1 // loop_header
      %s21 = sphi 0, %s25
      %p22 = scmp.ge.s32.totalorder %s21, 4
      %s31 = sphi 0, %s33
      %s34 = sphi 0, %s31
      %s35 = sphi 0, %s34
      %s51 = sphi 0, %s35
      %s57 = sphi 0, %s59
      %s60 = sphi 0, %s57
      %s61 = sphi 0, %s60
      %s77 = sphi 0, %s61
      %s81 = sphi 0, %s81
      %s83 = sphi 0, %s81
      %s84 = sphi 0, %s83
      %s98 = sphi 0, %s84
      %s102 = sphi 0, %s102
      %s104 = sphi 0, %s102
      %s105 = sphi 0, %s104
      %s119 = sphi 0, %s105
      %s123 = sphi 0, %s123
      %s125 = sphi 0, %s123
      %s126 = sphi 0, %s125
      %s140 = sphi 0, %s126
      %s146 = sphi 0, %s148
      %s149 = sphi 0, %s146
      %s150 = sphi 0, %s149
      %s166 = sphi 0, %s150
    $region4: #{tpu_custom_call.1} parent=1 // loop_header_branch
      %24 = sbr.rel (%p22) target = $region8
    $region5: #{tpu_custom_call.1} parent=1 // loop_body
      %s26 = ssub.s32 %s21, 1
      %s27 = ssub.s32 %s21, 2
      %s28 = sadd.s32 %s21, 1
      %s29 = ssub.s32 %s21, %s28
      %p30 = scmp.eq.s32.totalorder %s29, 0
      %s32 = sadd.s32 %s31, 1
      %s33 = scalar_select %p30, %s31, %s32
      %p36 = pneg %p30
      %p37 = scmp.eq.s32.totalorder %s21, 1
      %p38 = por %p36, %p37
      %p39 = scmp.ne.s32.totalorder %s31, %s34
      %p40 = scmp.eq.s32.totalorder %s21, 0
      %p41 = por %p39, %p40
      %p42 = scmp.ne.s32.totalorder %s31, %s34
      %p43 = scmp.eq.s32.totalorder %s26, 1
      %p44 = por %p42, %p43
      %p45 = scmp.ne.s32.totalorder %s34, %s35
      %p46 = scmp.eq.s32.totalorder %s26, 0
      %p47 = por %p45, %p46
      %p48 = scmp.ne.s32.totalorder %s34, %s35
      %p49 = scmp.eq.s32.totalorder %s27, 1
      %p50 = por %p48, %p49
      %p52 = scmp.ne.s32.totalorder %s35, %s51
      %p53 = scmp.eq.s32.totalorder %s27, 0
      %p54 = por %p52, %p53
      %s55 = ssub.s32 %s21, %s28
      %p56 = scmp.eq.s32.totalorder %s55, 0
      %s58 = sadd.s32 %s57, 1
      %s59 = scalar_select %p56, %s57, %s58
      %p62 = pneg %p56
      %p63 = scmp.eq.s32.totalorder %s21, 1
      %p64 = por %p62, %p63
      %p65 = scmp.ne.s32.totalorder %s57, %s60
      %p66 = scmp.eq.s32.totalorder %s21, 0
      %p67 = por %p65, %p66
      %p68 = scmp.ne.s32.totalorder %s57, %s60
      %p69 = scmp.eq.s32.totalorder %s26, 1
      %p70 = por %p68, %p69
      %p71 = scmp.ne.s32.totalorder %s60, %s61
      %p72 = scmp.eq.s32.totalorder %s26, 0
      %p73 = por %p71, %p72
      %p74 = scmp.ne.s32.totalorder %s60, %s61
      %p75 = scmp.eq.s32.totalorder %s27, 1
      %p76 = por %p74, %p75
      %p78 = scmp.ne.s32.totalorder %s61, %s77
      %p79 = scmp.eq.s32.totalorder %s27, 0
      %p80 = por %p78, %p79
      %s82 = sadd.s32 %s81, 1
      %p85 = scmp.eq.s32.totalorder %s21, 1
      %p86 = scmp.ne.s32.totalorder %s81, %s83
      %p87 = scmp.eq.s32.totalorder %s21, 0
      %p88 = por %p86, %p87
      %p89 = scmp.ne.s32.totalorder %s81, %s83
      %p90 = scmp.eq.s32.totalorder %s26, 1
      %p91 = por %p89, %p90
      %p92 = scmp.ne.s32.totalorder %s83, %s84
      %p93 = scmp.eq.s32.totalorder %s26, 0
      %p94 = por %p92, %p93
      %p95 = scmp.ne.s32.totalorder %s83, %s84
      %p96 = scmp.eq.s32.totalorder %s27, 1
      %p97 = por %p95, %p96
      %p99 = scmp.ne.s32.totalorder %s84, %s98
      %p100 = scmp.eq.s32.totalorder %s27, 0
      %p101 = por %p99, %p100
      %s103 = sadd.s32 %s102, 1
      %p106 = scmp.eq.s32.totalorder %s21, 1
      %p107 = scmp.ne.s32.totalorder %s102, %s104
      %p108 = scmp.eq.s32.totalorder %s21, 0
      %p109 = por %p107, %p108
      %p110 = scmp.ne.s32.totalorder %s102, %s104
      %p111 = scmp.eq.s32.totalorder %s26, 1
      %p112 = por %p110, %p111
      %p113 = scmp.ne.s32.totalorder %s104, %s105
      %p114 = scmp.eq.s32.totalorder %s26, 0
      %p115 = por %p113, %p114
      %p116 = scmp.ne.s32.totalorder %s104, %s105
      %p117 = scmp.eq.s32.totalorder %s27, 1
      %p118 = por %p116, %p117
      %p120 = scmp.ne.s32.totalorder %s105, %s119
      %p121 = scmp.eq.s32.totalorder %s27, 0
      %p122 = por %p120, %p121
      %s124 = sadd.s32 %s123, 1
      %p127 = scmp.eq.s32.totalorder %s21, 1
      %p128 = scmp.ne.s32.totalorder %s123, %s125
      %p129 = scmp.eq.s32.totalorder %s21, 0
      %p130 = por %p128, %p129
      %p131 = scmp.ne.s32.totalorder %s123, %s125
      %p132 = scmp.eq.s32.totalorder %s26, 1
      %p133 = por %p131, %p132
      %p134 = scmp.ne.s32.totalorder %s125, %s126
      %p135 = scmp.eq.s32.totalorder %s26, 0
      %p136 = por %p134, %p135
      %p137 = scmp.ne.s32.totalorder %s125, %s126
      %p138 = scmp.eq.s32.totalorder %s27, 1
      %p139 = por %p137, %p138
      %p141 = scmp.ne.s32.totalorder %s126, %s140
      %p142 = scmp.eq.s32.totalorder %s27, 0
      %p143 = por %p141, %p142
      %s144 = ssub.s32 %s21, %s28
      %p145 = scmp.eq.s32.totalorder %s144, 0
      %s147 = sadd.s32 %s146, 1
      %s148 = scalar_select %p145, %s146, %s147
      %p151 = pneg %p145
      %p152 = scmp.eq.s32.totalorder %s21, 1
      %p153 = por %p151, %p152
      %p154 = scmp.ne.s32.totalorder %s146, %s149
      %p155 = scmp.eq.s32.totalorder %s21, 0
      %p156 = por %p154, %p155
      %p157 = scmp.ne.s32.totalorder %s146, %s149
      %p158 = scmp.eq.s32.totalorder %s26, 1
      %p159 = por %p157, %p158
      %p160 = scmp.ne.s32.totalorder %s149, %s150
      %p161 = scmp.eq.s32.totalorder %s26, 0
      %p162 = por %p160, %p161
      %p163 = scmp.ne.s32.totalorder %s149, %s150
      %p164 = scmp.eq.s32.totalorder %s27, 1
      %p165 = por %p163, %p164
      %p167 = scmp.ne.s32.totalorder %s150, %s166
      %p168 = scmp.eq.s32.totalorder %s27, 0
      %p169 = por %p167, %p168
      %p170 = scmp.le.s32.totalorder 1, %s21
      %p171 = scmp.lt.s32.totalorder %s21, 3
      %p172 = pnand %p170, %p171
      %p173 = pneg %p172
      // Predicated region
      $region9: #{tpu_custom_call.1} parent=5 // pred_check
        _
      $region10: #{tpu_custom_call.1} parent=5 // pred_check_branch
        %175 = sbr.rel (%p172) target = $region12
      $region11: #{tpu_custom_call.1} parent=5 // pred_region
        %s176 = ssub.s32 %s21, 1
        // Predicated region
        $region13: #{tpu_custom_call.1} parent=11 // pred_check
          %p177 = pneg %p94
        $region14: #{tpu_custom_call.1} parent=11 // pred_check_branch
          %179 = sbr.rel (%p177) target = $region16
        $region15: #{tpu_custom_call.1} parent=11 // pred_region
          %s181 = ssub.s32 128, 128
          %182 = vsyncadd [#allocation6], %s181
          %s184 = sshll.u32 [#allocation7], 4
          %s185 = int_to_ptr.vmem [resolvable:$true] %s184
          %187 = dma.hbm_to_vmem [thread:$0]  %s2, 128, %s185, [#allocation6]
        $region16: #{tpu_custom_call.1} parent=11 // pred_fallthru
          _
        // Predicated region
        $region17: #{tpu_custom_call.1} parent=11 // pred_check
          %p188 = pneg %p115
        $region18: #{tpu_custom_call.1} parent=11 // pred_check_branch
          %190 = sbr.rel (%p188) target = $region20
        $region19: #{tpu_custom_call.1} parent=11 // pred_region
          _
        $region20: #{tpu_custom_call.1} parent=11 // pred_fallthru
          _
        // Predicated region
        $region21: #{tpu_custom_call.1} parent=11 // pred_check
          %p191 = pneg %p136
        $region22: #{tpu_custom_call.1} parent=11 // pred_check_branch
          %193 = sbr.rel (%p191) target = $region24
        $region23: #{tpu_custom_call.1} parent=11 // pred_region
          %s195 = ssub.s32 512, 512
          %196 = vsyncadd [#allocation9], %s195
          %s197 = sshll.u32 [#allocation8], 4
          %s198 = int_to_ptr.vmem [resolvable:$true] %s197
          %203 = dma.hbm_to_vmem [thread:$0]  %s4, 512, %s198, [#allocation9], 256, 256, 16
        $region24: #{tpu_custom_call.1} parent=11 // pred_fallthru
          _
      $region12: #{tpu_custom_call.1} parent=5 // pred_fallthru
        _
      %p204 = scmp.lt.s32.totalorder %s21, 2
      // Predicated region
      $region25: #{tpu_custom_call.1} parent=5 // pred_check
        %p205 = pneg %p204
      $region26: #{tpu_custom_call.1} parent=5 // pred_check_branch
        %207 = sbr.rel (%p205) target = $region28
      $region27: #{tpu_custom_call.1} parent=5 // pred_region
        // Predicated region
        $region29: #{tpu_custom_call.1} parent=27 // pred_check
          %p208 = pneg %p41
        $region30: #{tpu_custom_call.1} parent=27 // pred_check_branch
          %210 = sbr.rel (%p208) target = $region32
        $region31: #{tpu_custom_call.1} parent=27 // pred_region
          %s211 = sand.u32 %s31, 1
          %s212 = scalar_lea.sflag [#allocation3], %s211
          %s213 = sand.u32 %s31, 1
          %s214 = smul.addr %s213, 8
          %s215 = scalar_lea.vmem [#allocation2], %s214
          %s216 = smul.u32 2, %s21
          %s218 = ssub.s32 128, 128
          %219 = vsyncadd %s212, %s218
          %s220 = smul.addr %s216, 64
          %s221 = scalar_lea.hbm %s0, %s220
          %s223 = sshll.u32 %s215, 4
          %s224 = int_to_ptr.vmem [resolvable:$true] %s223
          %226 = dma.hbm_to_vmem [thread:$0]  %s221, 128, %s224, %s212
        $region32: #{tpu_custom_call.1} parent=27 // pred_fallthru
          _
        // Predicated region
        $region33: #{tpu_custom_call.1} parent=27 // pred_check
          %p227 = pneg %p67
        $region34: #{tpu_custom_call.1} parent=27 // pred_check_branch
          %229 = sbr.rel (%p227) target = $region36
        $region35: #{tpu_custom_call.1} parent=27 // pred_region
          %s230 = sand.u32 %s21, 1
          %s231 = scalar_lea.sflag [#allocation6], %s230
          %s232 = sand.u32 %s57, 1
          %s233 = smul.addr %s232, 16
          %s234 = scalar_lea.vmem [#allocation5], %s233
          %s235 = smul.u32 2, %s21
          %s237 = ssub.s32 256, 256
          %238 = vsyncadd %s231, %s237
          %s239 = smul.addr %s235, 128
          %s240 = scalar_lea.hbm %s1, %s239
          %s242 = sshll.u32 %s234, 4
          %s243 = int_to_ptr.vmem [resolvable:$true] %s242
          %245 = dma.hbm_to_vmem [thread:$0]  %s240, 256, %s243, %s231
        $region36: #{tpu_custom_call.1} parent=27 // pred_fallthru
          _
      $region28: #{tpu_custom_call.1} parent=5 // pred_fallthru
        _
      %p246 = scmp.le.s32.totalorder 1, %s21
      %p247 = scmp.lt.s32.totalorder %s21, 3
      %p248 = pnand %p246, %p247
      %p249 = pneg %p248
      // Predicated region
      $region37: #{tpu_custom_call.1} parent=5 // pred_check
        _
      $region38: #{tpu_custom_call.1} parent=5 // pred_check_branch
        %251 = sbr.rel (%p248) target = $region40
      $region39: #{tpu_custom_call.1} parent=5 // pred_region
        %s252 = ssub.s32 %s21, 1
        %s253 = sand.u32 %s34, 1
        %s254 = scalar_lea.sflag [#allocation3], %s253
        %s255 = sand.u32 %s34, 1
        %s256 = smul.addr %s255, 8
        %s257 = scalar_lea.vmem [#allocation2], %s256
        // Predicated region
        $region41: #{tpu_custom_call.1} parent=39 // pred_check
          %p258 = pneg %p47
        $region42: #{tpu_custom_call.1} parent=39 // pred_check_branch
          %260 = sbr.rel (%p258) target = $region44
        $region43: #{tpu_custom_call.1} parent=39 // pred_region
          %261 = dma.done %s254, 128
        $region44: #{tpu_custom_call.1} parent=39 // pred_fallthru
          _
        %s262 = sand.u32 %s26, 1
        %s263 = scalar_lea.sflag [#allocation6], %s262
        %s264 = sand.u32 %s60, 1
        %s265 = smul.addr %s264, 16
        %s266 = scalar_lea.vmem [#allocation5], %s265
        // Predicated region
        $region45: #{tpu_custom_call.1} parent=39 // pred_check
          %p267 = pneg %p73
        $region46: #{tpu_custom_call.1} parent=39 // pred_check_branch
          %269 = sbr.rel (%p267) target = $region48
        $region47: #{tpu_custom_call.1} parent=39 // pred_region
          %270 = dma.done %s263, 256
        $region48: #{tpu_custom_call.1} parent=39 // pred_fallthru
          _
        // Predicated region
        $region49: #{tpu_custom_call.1} parent=39 // pred_check
          %p271 = pneg %p94
        $region50: #{tpu_custom_call.1} parent=39 // pred_check_branch
          %273 = sbr.rel (%p271) target = $region52
        $region51: #{tpu_custom_call.1} parent=39 // pred_region
          %274 = dma.done [#allocation6], 128
        $region52: #{tpu_custom_call.1} parent=39 // pred_fallthru
          _
        // Predicated region
        $region53: #{tpu_custom_call.1} parent=39 // pred_check
          %p275 = pneg %p136
        $region54: #{tpu_custom_call.1} parent=39 // pred_check_branch
          %277 = sbr.rel (%p275) target = $region56
        $region55: #{tpu_custom_call.1} parent=39 // pred_region
          %278 = dma.done [#allocation9], 512
        $region56: #{tpu_custom_call.1} parent=39 // pred_fallthru
          _
        %s279 = sand.u32 %s34, 1
        %s280 = scalar_lea.sflag [#allocation3], %s279
        %s281 = sand.u32 %s34, 1
        %s282 = smul.addr %s281, 8
        %s283 = scalar_lea.vmem [#allocation2], %s282
        %p284 = pneg %p47
        %p285 = pneg %p44
        %s286 = sand.u32 %s26, 1
        %s287 = scalar_lea.sflag [#allocation6], %s286
        %s288 = sand.u32 %s60, 1
        %s289 = smul.addr %s288, 16
        %s290 = scalar_lea.vmem [#allocation5], %s289
        %p291 = pneg %p73
        %p292 = pneg %p70
        %p293 = pneg %p94
        %p294 = pneg %p91
        %p295 = pneg %p115
        %p296 = pneg %p112
        %p297 = pneg %p136
        %p298 = pneg %p133
        %p299 = pneg %p162
        %p300 = pneg %p159
        %s301 = sand.u32 %s149, 1
        %s302 = scalar_lea.sflag [#allocation4], %s301
        %s303 = sand.u32 %s149, 1
        %s304 = smul.addr %s303, 16
        %s305 = scalar_lea.vmem [#allocation10], %s304
        %s306 = smul.u32 2, %s26
        %s307 = smul.u32 2, %s26
        %s308 = smul.u32 2, %s26
        %v309 = vld [vmem:[#allocation8] sm:$0xff]
        %v310 = vld [vmem:[#allocation8 + $0x8] sm:$0xff]
        %v311 = vld [vmem:[#allocation8 + $0x10] sm:$0x1]
        %v312 = vld [vmem:[#allocation8 + $0x18] sm:$0x1]
        %v313 = vld [vmem:[%s257] sm:$0xff]
        %v315 = vcombine.high %v313, %v313
        %317 = vrot.lane.b32.xlu0 %v313, 17
        %v318 = vpop.permute.xlu0 %317
        %319 = vrot.lane.b32.xlu0 %v315, 17
        %v320 = vpop.permute.xlu0 %319
        %v321 = vlaneseq
        %v322 = vand.u32 %v321, 127
        %vm323 = vcmp.lt.s32.totalorder %v322, 17
        %v324 = vsel %vm323, %v318, %v320
        %v325 = vsel %vm323, %v320, %v318
        %v326 = vlaneseq
        %v327 = vshrl.u32 %v326, 7
        %v328 = vsub.s32 0, %v327
        %v329 = vrot.slane %v309, %v328
        %v330 = vlaneseq
        %v331 = vshrl.u32 %v330, 7
        %v332 = vsub.s32 0, %v331
        %v333 = vrot.slane %v310, %v332
        %v334 = vmul.f32 %v325, %v329
        %v335 = vmul.f32 %v324, %v333
        %336 = vrot.lane.b32.xlu0 %v313, 16
        %v337 = vpop.permute.xlu0 %336
        %338 = vrot.lane.b32.xlu0 %v315, 16
        %v339 = vpop.permute.xlu0 %338
        %vm340 = vcmp.lt.s32.totalorder %v322, 16
        %v341 = vsel %vm340, %v337, %v339
        %v342 = vsel %vm340, %v339, %v337
        %v343 = vlaneseq
        %v344 = vshrl.u32 %v343, 7
        %v345 = vsub.s32 1, %v344
        %v346 = vrot.slane %v309, %v345
        %v347 = vlaneseq
        %v348 = vshrl.u32 %v347, 7
        %v349 = vsub.s32 1, %v348
        %v350 = vrot.slane %v310, %v349
        %v351 = vmul.f32 %v342, %v346
        %v352 = vmul.f32 %v341, %v350
        %353 = vrot.lane.b32.xlu0 %v313, 15
        %v354 = vpop.permute.xlu0 %353
        %355 = vrot.lane.b32.xlu0 %v315, 15
        %v356 = vpop.permute.xlu0 %355
        %vm357 = vcmp.lt.s32.totalorder %v322, 15
        %v358 = vsel %vm357, %v354, %v356
        %v359 = vsel %vm357, %v356, %v354
        %v360 = vlaneseq
        %v361 = vshrl.u32 %v360, 7
        %v362 = vsub.s32 2, %v361
        %v363 = vrot.slane %v309, %v362
        %v364 = vlaneseq
        %v365 = vshrl.u32 %v364, 7
        %v366 = vsub.s32 2, %v365
        %v367 = vrot.slane %v310, %v366
        %v368 = vmul.f32 %v359, %v363
        %v369 = vmul.f32 %v358, %v367
        %370 = vrot.lane.b32.xlu0 %v313, 1
        %v371 = vpop.permute.xlu0 %370
        %372 = vrot.lane.b32.xlu0 %v315, 1
        %v373 = vpop.permute.xlu0 %372
        %vm374 = vcmp.lt.s32.totalorder %v322, 1
        %v375 = vsel %vm374, %v371, %v373
        %v376 = vsel %vm374, %v373, %v371
        %v377 = vlaneseq
        %v378 = vshrl.u32 %v377, 7
        %v379 = vsub.s32 3, %v378
        %v380 = vrot.slane %v309, %v379
        %v381 = vlaneseq
        %v382 = vshrl.u32 %v381, 7
        %v383 = vsub.s32 3, %v382
        %v384 = vrot.slane %v310, %v383
        %v385 = vmul.f32 %v376, %v380
        %v386 = vmul.f32 %v375, %v384
        %v387 = vlaneseq
        %v388 = vshrl.u32 %v387, 7
        %v389 = vsub.s32 4, %v388
        %v390 = vrot.slane %v309, %v389
        %v391 = vlaneseq
        %v392 = vshrl.u32 %v391, 7
        %v393 = vsub.s32 4, %v392
        %v394 = vrot.slane %v310, %v393
        %v397 = vcombine.low %v390, %v394
        %v399 = vmul.f32 %v313, %v397
        %400 = vrot.lane.b32.xlu0 %v313, 127
        %v401 = vpop.permute.xlu0 %400
        %402 = vrot.lane.b32.xlu0 %v315, 127
        %v403 = vpop.permute.xlu0 %402
        %vm404 = vcmp.lt.s32.totalorder %v322, 127
        %v405 = vsel %vm404, %v401, %v403
        %v406 = vsel %vm404, %v403, %v401
        %v407 = vlaneseq
        %v408 = vshrl.u32 %v407, 7
        %v409 = vsub.s32 5, %v408
        %v410 = vrot.slane %v309, %v409
        %v411 = vlaneseq
        %v412 = vshrl.u32 %v411, 7
        %v413 = vsub.s32 5, %v412
        %v414 = vrot.slane %v310, %v413
        %v415 = vmul.f32 %v405, %v410
        %v416 = vmul.f32 %v406, %v414
        %417 = vrot.lane.b32.xlu0 %v313, 113
        %v418 = vpop.permute.xlu0 %417
        %419 = vrot.lane.b32.xlu0 %v315, 113
        %v420 = vpop.permute.xlu0 %419
        %vm421 = vcmp.lt.s32.totalorder %v322, 113
        %v422 = vsel %vm421, %v418, %v420
        %v423 = vsel %vm421, %v420, %v418
        %v424 = vlaneseq
        %v425 = vshrl.u32 %v424, 7
        %v426 = vsub.s32 6, %v425
        %v427 = vrot.slane %v309, %v426
        %v428 = vlaneseq
        %v429 = vshrl.u32 %v428, 7
        %v430 = vsub.s32 6, %v429
        %v431 = vrot.slane %v310, %v430
        %v432 = vmul.f32 %v422, %v427
        %v433 = vmul.f32 %v423, %v431
        %434 = vrot.lane.b32.xlu0 %v313, 112
        %v435 = vpop.permute.xlu0 %434
        %436 = vrot.lane.b32.xlu0 %v315, 112
        %v437 = vpop.permute.xlu0 %436
        %vm438 = vcmp.lt.s32.totalorder %v322, 112
        %v439 = vsel %vm438, %v435, %v437
        %v440 = vsel %vm438, %v437, %v435
        %v441 = vlaneseq
        %v442 = vshrl.u32 %v441, 7
        %v443 = vsub.s32 7, %v442
        %v444 = vrot.slane %v309, %v443
        %v445 = vlaneseq
        %v446 = vshrl.u32 %v445, 7
        %v447 = vsub.s32 7, %v446
        %v448 = vrot.slane %v310, %v447
        %v449 = vmul.f32 %v439, %v444
        %v450 = vmul.f32 %v440, %v448
        %451 = vrot.lane.b32.xlu0 %v313, 111
        %v452 = vpop.permute.xlu0 %451
        %453 = vrot.lane.b32.xlu0 %v315, 111
        %v454 = vpop.permute.xlu0 %453
        %vm455 = vcmp.lt.s32.totalorder %v322, 111
        %v456 = vsel %vm455, %v452, %v454
        %v457 = vsel %vm455, %v454, %v452
        %v458 = vlaneseq
        %v459 = vshrl.u32 %v458, 7
        %v460 = vsub.s32 0, %v459
        %v461 = vrot.slane %v311, %v460
        %v462 = vlaneseq
        %v463 = vshrl.u32 %v462, 7
        %v464 = vsub.s32 0, %v463
        %v465 = vrot.slane %v312, %v464
        %v466 = vmul.f32 %v456, %v461
        %v467 = vmul.f32 %v457, %v465
        %v470 = vrot.slane %v351, 4
        %v471 = vrot.slane %v352, 4
        %v476 = vrot.slane %v385, 4
        %v477 = vrot.slane %v386, 4
        %v481 = vcombine.high %v399, %v399
        %v485 = vrot.slane %v415, 4
        %v486 = vrot.slane %v416, 4
        %v491 = vrot.slane %v449, 4
        %v492 = vrot.slane %v450, 4
        %vm495 = vcmask 1043456
        %v496 = vsel %vm495, %v334, %v470
        %v497 = vsel %vm495, %v335, %v471
        %v498 = vsel %vm495, %v368, %v476
        %v499 = vsel %vm495, %v369, %v477
        %v500 = vsel %vm495, %v399, %v485
        %v501 = vsel %vm495, %v481, %v486
        %v502 = vsel %vm495, %v432, %v491
        %v503 = vsel %vm495, %v433, %v492
        %v504 = vld [vmem:[#allocation7] sm:$0xff]
        %vm505 = vcmask 293888
        %v507 = vsel %vm505, %v504, 0
        %v510 = vsel %vm495, %v466, 0
        %v513 = vsel %vm495, %v467, 0
        %515 = vmatprep.subr.mxu0 %v497
        %516 = vmatpush1.msra.mxu0 %v496
        %517 = vmatprep.subr.mxu0 %v499
        %518 = vmatpush1.msra.mxu0 %v498
        %519 = vmatprep.subr.mxu0 %v501
        %520 = vmatpush1.msra.mxu0 %v500
        %521 = vmatprep.subr.mxu0 %v503
        %522 = vmatpush1.msra.mxu0 %v502
        %523 = vmatprep.subr.mxu0 %v513
        %524 = vmatpush1.msra.mxu0 %v510
        %525 = vmatprep.subr.mxu0 0.0
        %526 = vmatpush1.msra.mxu0 0.0
        %527 = vmatprep.subr.mxu0 0.0
        %528 = vmatpush1.msra.mxu0 0.0
        %529 = vmatprep.subr.mxu0 0.0
        %530 = vmatpush1.msra.mxu0 0.0
        %531 = vmatprep.subr.mxu0 0.0
        %532 = vmatpush1.msra.mxu0 0.0
        %533 = vmatprep.subr.mxu0 0.0
        %534 = vmatpush1.msra.mxu0 0.0
        %535 = vmatprep.subr.mxu0 0.0
        %536 = vmatpush1.msra.mxu0 0.0
        %537 = vmatprep.subr.mxu0 0.0
        %538 = vmatpush1.msra.mxu0 0.0
        %539 = vmatprep.subr.mxu0 0.0
        %540 = vmatpush1.msra.mxu0 0.0
        %541 = vmatprep.subr.mxu0 0.0
        %542 = vmatpush1.msra.mxu0 0.0
        %543 = vmatprep.subr.mxu0 0.0
        %544 = vmatpush1.msra.mxu0 0.0
        %545 = vmatprep.subr.mxu0 0.0
        %546 = vmatpush1.msra.mxu0 0.0
        %547 = vmatprep.subr.mxu0 0.0
        %548 = vmatpush1.msra.mxu0 0.0
        %549 = vmatprep.subr.mxu0 0.0
        %550 = vmatpush1.msra.mxu0 0.0
        %551 = vmatprep.subr.mxu0 0.0
        %552 = vmatpush1.msra.mxu0 0.0
        %553 = vmatprep.subr.mxu0 0.0
        %554 = vmatpush1.msra.mxu0 0.0
        %555 = vmatprep.subr.mxu0 0.0
        %556 = vmatpush1.msra.mxu0 0.0
        %557 = vmatprep.subr.mxu0 0.0
        %558 = vmatpush1.msra.mxu0 0.0
        %559 = vmatprep.subr.mxu0 0.0
        %560 = vmatpush1.msra.mxu0 0.0
        %561 = vmatprep.subr.mxu0 0.0
        %562 = vmatpush1.msra.mxu0 0.0
        %563 = vmatprep.subr.mxu0 0.0
        %564 = vmatpush1.msra.mxu0 0.0
        %565 = vmatprep.subr.mxu0 0.0
        %566 = vmatpush1.msra.mxu0 0.0
        %567 = vmatprep.subr.mxu0 0.0
        %568 = vmatpush1.msra.mxu0 0.0
        %569 = vmatprep.subr.mxu0 0.0
        %570 = vmatpush1.msra.mxu0 0.0
        %571 = vmatprep.subr.mxu0 0.0
        %572 = vmatpush1.msra.mxu0 0.0
        %573 = vmatprep.subr.mxu0 0.0
        %574 = vmatpush1.msra.mxu0 0.0
        %575 = vmatprep.subr.mxu0 0.0
        %576 = vmatpush1.msra.mxu0 0.0
        %577 = vmatprep.subr.mxu0 0.0
        %578 = vmatpush1.msra.mxu0 0.0
        %579 = vmatprep.mubr.f32.mxu0 0.0
        %580 = vmatmul.mubr.f32.gmra.mrb[0].mxu0 %v507
        %v581 = vpop.f32.mrb[0].mxu0
        %v582 = vadd.f32 0.0, %v581
        %v583 = vpop.f32.mrb[0].mxu0
        %v584 = vadd.f32 0.0, %v583
        %585 = vdwg.mxu0
        %v586 = vmax.f32 %v582, 0.0
        %v587 = vmax.f32 %v584, 0.0
        %588 = vrot.lane.b32.xlu0 %v586, 17
        %v589 = vpop.permute.xlu0 %588
        %590 = vrot.lane.b32.xlu0 %v587, 17
        %v591 = vpop.permute.xlu0 %590
        %v592 = vsel %vm323, %v589, %v591
        %v593 = vsel %vm323, %v591, %v589
        %v594 = vmul.f32 %v593, %v329
        %v595 = vmul.f32 %v592, %v333
        %596 = vrot.lane.b32.xlu0 %v586, 16
        %v597 = vpop.permute.xlu0 %596
        %598 = vrot.lane.b32.xlu0 %v587, 16
        %v599 = vpop.permute.xlu0 %598
        %v600 = vsel %vm340, %v597, %v599
        %v601 = vsel %vm340, %v599, %v597
        %v602 = vmul.f32 %v601, %v346
        %v603 = vmul.f32 %v600, %v350
        %604 = vrot.lane.b32.xlu0 %v586, 15
        %v605 = vpop.permute.xlu0 %604
        %606 = vrot.lane.b32.xlu0 %v587, 15
        %v607 = vpop.permute.xlu0 %606
        %v608 = vsel %vm357, %v605, %v607
        %v609 = vsel %vm357, %v607, %v605
        %v610 = vmul.f32 %v609, %v363
        %v611 = vmul.f32 %v608, %v367
        %612 = vrot.lane.b32.xlu0 %v586, 1
        %v613 = vpop.permute.xlu0 %612
        %614 = vrot.lane.b32.xlu0 %v587, 1
        %v615 = vpop.permute.xlu0 %614
        %v616 = vsel %vm374, %v613, %v615
        %v617 = vsel %vm374, %v615, %v613
        %v618 = vmul.f32 %v617, %v380
        %v619 = vmul.f32 %v616, %v384
        %v620 = vmul.f32 %v586, %v390
        %v621 = vmul.f32 %v587, %v394
        %622 = vrot.lane.b32.xlu0 %v586, 127
        %v623 = vpop.permute.xlu0 %622
        %624 = vrot.lane.b32.xlu0 %v587, 127
        %v625 = vpop.permute.xlu0 %624
        %v626 = vsel %vm404, %v623, %v625
        %v627 = vsel %vm404, %v625, %v623
        %v628 = vmul.f32 %v626, %v410
        %v629 = vmul.f32 %v627, %v414
        %630 = vrot.lane.b32.xlu0 %v586, 113
        %v631 = vpop.permute.xlu0 %630
        %632 = vrot.lane.b32.xlu0 %v587, 113
        %v633 = vpop.permute.xlu0 %632
        %v634 = vsel %vm421, %v631, %v633
        %v635 = vsel %vm421, %v633, %v631
        %v636 = vmul.f32 %v634, %v427
        %v637 = vmul.f32 %v635, %v431
        %638 = vrot.lane.b32.xlu0 %v586, 112
        %v639 = vpop.permute.xlu0 %638
        %640 = vrot.lane.b32.xlu0 %v587, 112
        %v641 = vpop.permute.xlu0 %640
        %v642 = vsel %vm438, %v639, %v641
        %v643 = vsel %vm438, %v641, %v639
        %v644 = vmul.f32 %v642, %v444
        %v645 = vmul.f32 %v643, %v448
        %646 = vrot.lane.b32.xlu0 %v586, 111
        %v647 = vpop.permute.xlu0 %646
        %648 = vrot.lane.b32.xlu0 %v587, 111
        %v649 = vpop.permute.xlu0 %648
        %v650 = vsel %vm455, %v647, %v649
        %v651 = vsel %vm455, %v649, %v647
        %v652 = vmul.f32 %v650, %v461
        %v653 = vmul.f32 %v651, %v465
        %v654 = vld [vmem:[%s3] sm:$0xff]
        %v655 = vld [vmem:[%s266] sm:$0xff]
        %v656 = vld [vmem:[%s266 + $0x8] sm:$0xff]
        %vm657 = vcmask 588800
        %v659 = vsel %vm657, %v654, 0
        %661 = vmatprep.subr.mxu0 %v595
        %662 = vmatpush1.msra.mxu0 %v594
        %663 = vmatprep.subr.mxu0 %v603
        %664 = vmatpush1.msra.mxu0 %v602
        %665 = vmatprep.subr.mxu0 %v611
        %666 = vmatpush1.msra.mxu0 %v610
        %667 = vmatprep.subr.mxu0 %v619
        %668 = vmatpush1.msra.mxu0 %v618
        %669 = vmatprep.subr.mxu0 %v621
        %670 = vmatpush1.msra.mxu0 %v620
        %671 = vmatprep.subr.mxu0 %v629
        %672 = vmatpush1.msra.mxu0 %v628
        %673 = vmatprep.subr.mxu0 %v637
        %674 = vmatpush1.msra.mxu0 %v636
        %675 = vmatprep.subr.mxu0 %v645
        %676 = vmatpush1.msra.mxu0 %v644
        %677 = vmatprep.subr.mxu0 %v653
        %678 = vmatpush1.msra.mxu0 %v652
        %679 = vmatprep.subr.mxu0 0.0
        %680 = vmatpush1.msra.mxu0 0.0
        %681 = vmatprep.subr.mxu0 0.0
        %682 = vmatpush1.msra.mxu0 0.0
        %683 = vmatprep.subr.mxu0 0.0
        %684 = vmatpush1.msra.mxu0 0.0
        %685 = vmatprep.subr.mxu0 0.0
        %686 = vmatpush1.msra.mxu0 0.0
        %687 = vmatprep.subr.mxu0 0.0
        %688 = vmatpush1.msra.mxu0 0.0
        %689 = vmatprep.subr.mxu0 0.0
        %690 = vmatpush1.msra.mxu0 0.0
        %691 = vmatprep.subr.mxu0 0.0
        %692 = vmatpush1.msra.mxu0 0.0
        %693 = vmatprep.subr.mxu0 0.0
        %694 = vmatpush1.msra.mxu0 0.0
        %695 = vmatprep.subr.mxu0 0.0
        %696 = vmatpush1.msra.mxu0 0.0
        %697 = vmatprep.subr.mxu0 0.0
        %698 = vmatpush1.msra.mxu0 0.0
        %699 = vmatprep.subr.mxu0 0.0
        %700 = vmatpush1.msra.mxu0 0.0
        %701 = vmatprep.subr.mxu0 0.0
        %702 = vmatpush1.msra.mxu0 0.0
        %703 = vmatprep.subr.mxu0 0.0
        %704 = vmatpush1.msra.mxu0 0.0
        %705 = vmatprep.subr.mxu0 0.0
        %706 = vmatpush1.msra.mxu0 0.0
        %707 = vmatprep.subr.mxu0 0.0
        %708 = vmatpush1.msra.mxu0 0.0
        %709 = vmatprep.subr.mxu0 0.0
        %710 = vmatpush1.msra.mxu0 0.0
        %711 = vmatprep.subr.mxu0 0.0
        %712 = vmatpush1.msra.mxu0 0.0
        %713 = vmatprep.subr.mxu0 0.0
        %714 = vmatpush1.msra.mxu0 0.0
        %715 = vmatprep.subr.mxu0 0.0
        %716 = vmatpush1.msra.mxu0 0.0
        %717 = vmatprep.subr.mxu0 0.0
        %718 = vmatpush1.msra.mxu0 0.0
        %719 = vmatprep.subr.mxu0 0.0
        %720 = vmatpush1.msra.mxu0 0.0
        %721 = vmatprep.subr.mxu0 0.0
        %722 = vmatpush1.msra.mxu0 0.0
        %723 = vmatprep.subr.mxu0 0.0
        %724 = vmatpush1.msra.mxu0 0.0
        %725 = vmatprep.mubr.f32.mxu0 0.0
        %726 = vmatmul.mubr.f32.gmra.mrb[0].mxu0 %v659
        %v727 = vpop.f32.mrb[0].mxu0
        %v728 = vadd.f32 %v655, %v727
        %v729 = vpop.f32.mrb[0].mxu0
        %v730 = vadd.f32 %v656, %v729
        %731 = vdwg.mxu0
        %v732 = vmax.f32 %v728, 0.0
        %v733 = vmax.f32 %v730, 0.0
        %734 = vst [vmem:[%s305] sm:$0xff] %v732
        %735 = vst [vmem:[%s305 + $0x8] sm:$0xff] %v733
        %s736 = sand.u32 %s149, 1
        %s737 = scalar_lea.sflag [#allocation4], %s736
        %s738 = sand.u32 %s149, 1
        %s739 = smul.addr %s738, 16
        %s740 = scalar_lea.vmem [#allocation10], %s739
        // Predicated region
        $region57: #{tpu_custom_call.1} parent=39 // pred_check
          %p741 = pneg %p159
        $region58: #{tpu_custom_call.1} parent=39 // pred_check_branch
          %743 = sbr.rel (%p741) target = $region60
        $region59: #{tpu_custom_call.1} parent=39 // pred_region
          %s744 = smul.u32 2, %s26
          %s746 = ssub.s32 256, 256
          %747 = vsyncadd %s737, %s746
          %s748 = smul.addr %s744, 128
          %s749 = scalar_lea.hbm %s5, %s748
          %s751 = sshll.u32 %s740, 4
          %s752 = int_to_ptr.vmem [resolvable:$true] %s751
          %754 = dma.vmem_to_hbm [thread:$0]  %s752, 256, %s749, %s737
        $region60: #{tpu_custom_call.1} parent=39 // pred_fallthru
          _
      $region40: #{tpu_custom_call.1} parent=5 // pred_fallthru
        _
      %p755 = scmp.le.s32.totalorder 2, %s21
      // Predicated region
      $region61: #{tpu_custom_call.1} parent=5 // pred_check
        %p756 = pneg %p755
      $region62: #{tpu_custom_call.1} parent=5 // pred_check_branch
        %758 = sbr.rel (%p756) target = $region64
      $region63: #{tpu_custom_call.1} parent=5 // pred_region
        %s759 = ssub.s32 %s21, 2
        // Predicated region
        $region65: #{tpu_custom_call.1} parent=63 // pred_check
          %p760 = pneg %p165
        $region66: #{tpu_custom_call.1} parent=63 // pred_check_branch
          %762 = sbr.rel (%p760) target = $region68
        $region67: #{tpu_custom_call.1} parent=63 // pred_region
          %s763 = sand.u32 %s150, 1
          %s764 = scalar_lea.sflag [#allocation4], %s763
          %s765 = sand.u32 %s150, 1
          %s766 = smul.addr %s765, 16
          %s767 = scalar_lea.vmem [#allocation10], %s766
          %768 = dma.done %s764, 256
        $region68: #{tpu_custom_call.1} parent=63 // pred_fallthru
          _
      $region64: #{tpu_custom_call.1} parent=5 // pred_fallthru
        _
    $region6: #{tpu_custom_call.1} parent=1 // loop_footer
      %s25 = sadd.s32 1, %s21
    $region7: #{tpu_custom_call.1} parent=1 // loop_footer_branch
      %20 = sbr.rel target = $region3
    $region8: #{tpu_custom_call.1} parent=1 // loop_exit
      _
    %769 = vsyncpa [#allocation3], 1
    %s770 = scalar_lea.sflag [#allocation3], 1
    %771 = vsyncpa %s770, 1
    %772 = vsyncpa [#allocation6], 1
    %s773 = scalar_lea.sflag [#allocation6], 1
    %774 = vsyncpa %s773, 1
    %775 = vsyncpa [#allocation9], 1
    %776 = vsyncpa [#allocation4], 1
    %s777 = scalar_lea.sflag [#allocation4], 1
    %778 = vsyncpa %s777, 1

</llo_original>
